<compile_context>
chip_gen: v7x
topology: tpu7x:2x2x1
jax: 0.10.0
libtpu: 0.0.40
codegen_flags: <defaults>
</compile_context>

<pallas_src>
import functools

import jax
import jax.numpy as jnp
from jax.experimental import pallas as pl
from jax.experimental.pallas import tpu as pltpu

_PAD_BIAS = -1e30  # padded-class bias: exp(pad - max) == 0, never affects softmax


def _ensemble_kernel(x_ref, w_ref, b_ref, o_ref, *, n_models, cp):
    """One grid step == one batch tile.

    x_ref: (TB, D)       batch tile of inputs (bf16 MXU operand)
    w_ref: (D, M*Cp)     all models' weights fused along lanes (bf16)
    b_ref: (1, M*Cp)     fused biases, f32 (padded classes = -1e30)
    o_ref: (TB, Cp)      averaged log-probs for this batch tile (lane-dense)
    """
    # Single lane-dense matmul for every ensemble member; f32 accumulate.
    logits_all = jnp.dot(
        x_ref[...], w_ref[...], preferred_element_type=jnp.float32
    ) + b_ref[...]                                        # (TB, M*Cp) f32

    acc = jnp.zeros(o_ref.shape, jnp.float32)
    # Static unroll over the (small) ensemble; each slice is a 128-aligned
    # lane chunk, so slicing is free.
    for m in range(n_models):
        logits = logits_all[:, m * cp:(m + 1) * cp]       # (TB, Cp)
        mx = jnp.max(logits, axis=-1, keepdims=True)
        shifted = logits - mx
        lse = jnp.log(jnp.sum(jnp.exp(shifted), axis=-1, keepdims=True))
        acc = acc + (shifted - lse)                       # log_softmax, f32

    # Compile-time reciprocal: single VALU multiply per vreg.
    o_ref[...] = acc * (1.0 / n_models)


def ensemble_forward(x, weights, biases, *, mxu_dtype=jnp.bfloat16):
    """x: [B, D] f32, weights: [M, D, C] f32, biases: [M, C] f32 -> [B, C] f32."""
    B, D = x.shape
    M, Dw, C = weights.shape
    assert D == Dw and biases.shape == (M, C)
    assert M > 0

    # --- lane-dense fused layout (done once in the wrapper, plain JAX) -----
    cp = pl.cdiv(C, 128) * 128                             # padded class width
    w_t = jnp.transpose(weights, (1, 0, 2))                # (D, M, C)
    w_pad = jnp.pad(w_t, ((0, 0), (0, 0), (0, cp - C)))    # zero-pad classes
    w2 = w_pad.reshape(D, M * cp).astype(mxu_dtype)        # (D, M*Cp) bf16

    b_pad = jnp.pad(biases, ((0, 0), (0, cp - C)),
                    constant_values=_PAD_BIAS)             # (M, Cp) f32
    b2 = b_pad.reshape(1, M * cp).astype(jnp.float32)

    # --- batch tiling: sublane-aligned, "parallel" for v7x megacore --------
    tb = min(((max(B, 1) + 7) // 8) * 8, 128)              # tile rows (mult of 8)
    b_rows = pl.cdiv(B, tb) * tb
    x_p = jnp.pad(x, ((0, b_rows - B), (0, 0))).astype(mxu_dtype)

    out = pl.pallas_call(
        functools.partial(_ensemble_kernel, n_models=M, cp=cp),
        out_shape=jax.ShapeDtypeStruct((b_rows, cp), jnp.float32),
        grid_spec=pltpu.PrefetchScalarGridSpec(
            num_scalar_prefetch=0,
            grid=(b_rows // tb,),
            in_specs=[
                pl.BlockSpec((tb, D), lambda i: (i, 0)),        # batch tile
                pl.BlockSpec((D, M * cp), lambda i: (0, 0)),    # fused weights
                pl.BlockSpec((1, M * cp), lambda i: (0, 0)),    # fused biases
            ],
            out_specs=pl.BlockSpec((tb, cp), lambda i: (i, 0)),
        ),
        compiler_params=pltpu.CompilerParams(
            dimension_semantics=("parallel",),   # batch axis: safe to shard
        ),
    )(x_p, w2, b2)

    return out[:B, :C]


def ensemble_reference(x, weights, biases):
    """Pure-JAX (f32) reference matching PyTorch Ensemble.forward semantics."""
    M = weights.shape[0]
    acc = 0.0
    for i in range(M):
        logits = x @ weights[i] + biases[i]
        acc = acc + jax.nn.log_softmax(logits, axis=-1)
    return acc / M


if __name__ == "__main__":
    key = jax.random.PRNGKey(0)
    B, D, C, M = 8, 32, 16, 3  # batch, features, classes, ensemble size

    kx, kw, kb = jax.random.split(key, 3)
    x = jax.random.normal(kx, (B, D), dtype=jnp.float32)
    weights = 0.1 * jax.random.normal(kw, (M, D, C), dtype=jnp.float32)
    biases = 0.1 * jax.random.normal(kb, (M, C), dtype=jnp.float32)

    out = jax.block_until_ready(ensemble_forward(x, weights, biases))
    ref = ensemble_reference(x, weights, biases)

    assert out.shape == (B, C)
    err = jnp.max(jnp.abs(out - ref))
    # bf16 MXU operands (f32 accumulation, f32 log_softmax) -> ~1e-3 abs error.
    assert err < 2e-2, f"max abs err {err}"
    print("KERNEL_OK")
</pallas_src>

<mosaic_0001>
module attributes {stable_mosaic.version = 11 : i64} {
  func.func @_ensemble_kernel(%arg0: i32, %arg1: memref<8x32xbf16, #tpu.memory_space<vmem>>, %arg2: memref<32x384xbf16, #tpu.memory_space<vmem>>, %arg3: memref<1x384xf32, #tpu.memory_space<vmem>>, %arg4: memref<8x128xf32, #tpu.memory_space<vmem>>) attributes {dimension_semantics = [#tpu.dimension_semantics<parallel>], iteration_bounds = array<i64: 1>, scalar_prefetch = 0 : i64, scratch_operands = 0 : i64, tpu.core_type = #tpu.core_type<tc>, window_params = [{transform_indices = @transform_0, window_bounds = array<i64: 8, 32>}, {pipeline_mode = #tpu.pipeline_mode<synchronous>, transform_indices = @transform_1, window_bounds = array<i64: 32, 384>}, {pipeline_mode = #tpu.pipeline_mode<synchronous>, transform_indices = @transform_2, window_bounds = array<i64: 1, 384>}, {transform_indices = @transform_3, window_bounds = array<i64: 8, 128>}]} {
    %c0 = arith.constant 0 : index
    %c0_0 = arith.constant 0 : index
    %0 = vector.load %arg1[%c0, %c0_0] : memref<8x32xbf16, #tpu.memory_space<vmem>>, vector<8x32xbf16>
    %c0_1 = arith.constant 0 : index
    %c0_2 = arith.constant 0 : index
    %1 = vector.load %arg2[%c0_1, %c0_2] : memref<32x384xbf16, #tpu.memory_space<vmem>>, vector<32x384xbf16>
    %cst = arith.constant dense<0.000000e+00> : vector<8x384xf32>
    %2 = tpu.matmul %0, %1, %cst {dimension_numbers = #tpu.dot_dimension_numbers<[1], [0], [0], [1], [0, 0, 1, 1], [], []>} : vector<8x32xbf16>, vector<32x384xbf16>, vector<8x384xf32> -> vector<8x384xf32>
    %c0_3 = arith.constant 0 : index
    %c0_4 = arith.constant 0 : index
    %3 = vector.load %arg3[%c0_3, %c0_4] : memref<1x384xf32, #tpu.memory_space<vmem>>, vector<1x384xf32>
    %4 = vector.broadcast %3 : vector<1x384xf32> to vector<8x384xf32>
    %5 = arith.addf %2, %4 : vector<8x384xf32>
    %cst_5 = arith.constant 0.000000e+00 : f32
    %6 = vector.broadcast %cst_5 : f32 to vector<8x128xf32>
    %7 = vector.extract_strided_slice %5 {offsets = [0, 0], sizes = [8, 128], strides = [1, 1]} : vector<8x384xf32> to vector<8x128xf32>
    %cst_6 = arith.constant dense<0xFF800000> : vector<8xf32>
    %8 = vector.multi_reduction <maximumf>, %7, %cst_6 [1] : vector<8x128xf32> to vector<8xf32>
    %9 = vector.shape_cast %8 : vector<8xf32> to vector<8x1xf32>
    %10 = vector.broadcast %9 : vector<8x1xf32> to vector<8x128xf32>
    %11 = arith.subf %7, %10 : vector<8x128xf32>
    %12 = math.exp %11 : vector<8x128xf32>
    %cst_7 = arith.constant dense<0.000000e+00> : vector<8xf32>
    %13 = vector.multi_reduction <add>, %12, %cst_7 [1] : vector<8x128xf32> to vector<8xf32>
    %14 = vector.shape_cast %13 : vector<8xf32> to vector<8x1xf32>
    %15 = math.log %14 : vector<8x1xf32>
    %16 = vector.broadcast %15 : vector<8x1xf32> to vector<8x128xf32>
    %17 = arith.subf %11, %16 : vector<8x128xf32>
    %18 = arith.addf %6, %17 : vector<8x128xf32>
    %19 = vector.extract_strided_slice %5 {offsets = [0, 128], sizes = [8, 128], strides = [1, 1]} : vector<8x384xf32> to vector<8x128xf32>
    %cst_8 = arith.constant dense<0xFF800000> : vector<8xf32>
    %20 = vector.multi_reduction <maximumf>, %19, %cst_8 [1] : vector<8x128xf32> to vector<8xf32>
    %21 = vector.shape_cast %20 : vector<8xf32> to vector<8x1xf32>
    %22 = vector.broadcast %21 : vector<8x1xf32> to vector<8x128xf32>
    %23 = arith.subf %19, %22 : vector<8x128xf32>
    %24 = math.exp %23 : vector<8x128xf32>
    %cst_9 = arith.constant dense<0.000000e+00> : vector<8xf32>
    %25 = vector.multi_reduction <add>, %24, %cst_9 [1] : vector<8x128xf32> to vector<8xf32>
    %26 = vector.shape_cast %25 : vector<8xf32> to vector<8x1xf32>
    %27 = math.log %26 : vector<8x1xf32>
    %28 = vector.broadcast %27 : vector<8x1xf32> to vector<8x128xf32>
    %29 = arith.subf %23, %28 : vector<8x128xf32>
    %30 = arith.addf %18, %29 : vector<8x128xf32>
    %31 = vector.extract_strided_slice %5 {offsets = [0, 256], sizes = [8, 128], strides = [1, 1]} : vector<8x384xf32> to vector<8x128xf32>
    %cst_10 = arith.constant dense<0xFF800000> : vector<8xf32>
    %32 = vector.multi_reduction <maximumf>, %31, %cst_10 [1] : vector<8x128xf32> to vector<8xf32>
    %33 = vector.shape_cast %32 : vector<8xf32> to vector<8x1xf32>
    %34 = vector.broadcast %33 : vector<8x1xf32> to vector<8x128xf32>
    %35 = arith.subf %31, %34 : vector<8x128xf32>
    %36 = math.exp %35 : vector<8x128xf32>
    %cst_11 = arith.constant dense<0.000000e+00> : vector<8xf32>
    %37 = vector.multi_reduction <add>, %36, %cst_11 [1] : vector<8x128xf32> to vector<8xf32>
    %38 = vector.shape_cast %37 : vector<8xf32> to vector<8x1xf32>
    %39 = math.log %38 : vector<8x1xf32>
    %40 = vector.broadcast %39 : vector<8x1xf32> to vector<8x128xf32>
    %41 = arith.subf %35, %40 : vector<8x128xf32>
    %42 = arith.addf %30, %41 : vector<8x128xf32>
    %cst_12 = arith.constant 0.333333343 : f32
    %43 = vector.broadcast %cst_12 : f32 to vector<8x128xf32>
    %44 = arith.mulf %42, %43 : vector<8x128xf32>
    %c0_13 = arith.constant 0 : index
    %c0_14 = arith.constant 0 : index
    %45 = vector.load %arg4[%c0_13, %c0_14] : memref<8x128xf32, #tpu.memory_space<vmem>>, vector<8x128xf32>
    tpu.vector_store %arg4[%c0_13, %c0_14], %44 {strides = array<i32>} : memref<8x128xf32, #tpu.memory_space<vmem>>, vector<8x128xf32>,
    return
  }
  func.func @transform_0(%arg0: i32) -> (i32, i32) {
    %c0_i32 = arith.constant 0 : i32
    %c0_i32_0 = arith.constant 0 : i32
    return %arg0, %c0_i32 : i32, i32
  }
  func.func @transform_1(%arg0: i32) -> (i32, i32) {
    %c0_i32 = arith.constant 0 : i32
    %c0_i32_0 = arith.constant 0 : i32
    %c0_i32_1 = arith.constant 0 : i32
    return %c0_i32, %c0_i32_0 : i32, i32
  }
  func.func @transform_2(%arg0: i32) -> (i32, i32) {
    %c0_i32 = arith.constant 0 : i32
    %c0_i32_0 = arith.constant 0 : i32
    %c0_i32_1 = arith.constant 0 : i32
    return %c0_i32, %c0_i32_0 : i32, i32
  }
  func.func @transform_3(%arg0: i32) -> (i32, i32) {
    %c0_i32 = arith.constant 0 : i32
    %c0_i32_0 = arith.constant 0 : i32
    return %arg0, %c0_i32 : i32, i32
  }
}

</mosaic_0001>

<llo_original>
// kernel: tpu_custom_call.1
$region0: #{tpu_custom_call.1}
  #allocation0 [shape = 'u32[]', space=smem, size = 0x4, offset = 0x4, fixed_abs, tag = 'smem constant byte address 0x4 - core index']
  #allocation1 [shape = 'u32[144,128]{1,0:T(1,128)}', space=vmem, size = 0x12000, scoped, tag = 'internal scratch']
  %s0 = inlined_call_operand.hbm [shape: bf16[8,32], index: 0, kind: input, shape index: {}]
  %s1 = inlined_call_operand.hbm [shape: bf16[32,384], index: 1, kind: input, shape index: {}]
  %s2 = inlined_call_operand.vmem [shape: f32[1,384], index: 2, kind: input, shape index: {}]
  %s3 = inlined_call_operand.hbm [shape: f32[8,128], index: 3, kind: output, shape index: {}]
  %s4 = sld [smem:[#allocation0]]
  $region30: #{tpu_custom_call.1} parent=0
    _
  %s6 = ssub.s32 1, %s4
  %s7 = scalar_select 0, %s6, %s4
  $region1: #{tpu_custom_call.1} parent=0
    #allocation2 [shape = 'u8[2048]{0}', space=vmem, size = 0x800, scoped, tag = 'input window, operand 0, single buffered']
    #allocation3 [shape = 's32[1]{0}', space=sflag, size = 0x4, scoped, tag = 'scoped memory for tpu_custom_call.1']
    #allocation4 [shape = 's32[1]{0}', space=sflag, size = 0x4, scoped, tag = 'scoped memory for tpu_custom_call.1']
    #allocation5 [shape = 'u8[24576]{0}', space=vmem, size = 0x6000, scoped, tag = 'input window, operand 1, single buffered']
    #allocation6 [shape = 's32[1]{0}', space=sflag, size = 0x4, scoped, tag = 'scoped memory for tpu_custom_call.1']
    #allocation7 [shape = 'u8[4096]{0}', space=vmem, size = 0x1000, scoped, tag = 'output window, operand 0, single buffered']
    %8 = vsyncpa [#allocation3], 0
    %9 = vsyncpa [#allocation6], 0
    %10 = vsyncpa [#allocation4], 0
    // Predicated region
    $region2: #{tpu_custom_call.1} parent=1 // pred_check
      _
    $region3: #{tpu_custom_call.1} parent=1 // pred_check_branch
      %12 = sbr.rel (0) target = $region5
    $region4: #{tpu_custom_call.1} parent=1 // pred_region
      %s14 = ssub.s32 64, 64
      %15 = vsyncadd [#allocation3], %s14
      %s17 = sshll.u32 [#allocation2], 4
      %s18 = int_to_ptr.vmem [resolvable:$true] %s17
      %20 = dma.hbm_to_vmem [thread:$0]  %s0, 64, %s18, [#allocation3]
    $region5: #{tpu_custom_call.1} parent=1 // pred_fallthru
      _
    // Predicated region
    $region6: #{tpu_custom_call.1} parent=1 // pred_check
      _
    $region7: #{tpu_custom_call.1} parent=1 // pred_check_branch
      %22 = sbr.rel (0) target = $region9
    $region8: #{tpu_custom_call.1} parent=1 // pred_region
      %s24 = ssub.s32 768, 768
      %25 = vsyncadd [#allocation6], %s24
      %s26 = sshll.u32 [#allocation5], 4
      %s27 = int_to_ptr.vmem [resolvable:$true] %s26
      %32 = dma.hbm_to_vmem [thread:$0]  %s1, 768, %s27, [#allocation6], 192, 192, 12
    $region9: #{tpu_custom_call.1} parent=1 // pred_fallthru
      _
    // Predicated region
    $region10: #{tpu_custom_call.1} parent=1 // pred_check
      _
    $region11: #{tpu_custom_call.1} parent=1 // pred_check_branch
      %34 = sbr.rel (0) target = $region13
    $region12: #{tpu_custom_call.1} parent=1 // pred_region
      _
    $region13: #{tpu_custom_call.1} parent=1 // pred_fallthru
      _
    // Predicated region
    $region14: #{tpu_custom_call.1} parent=1 // pred_check
      _
    $region15: #{tpu_custom_call.1} parent=1 // pred_check_branch
      %36 = sbr.rel (0) target = $region17
    $region16: #{tpu_custom_call.1} parent=1 // pred_region
      %37 = dma.done [#allocation3], 64
    $region17: #{tpu_custom_call.1} parent=1 // pred_fallthru
      _
    // Predicated region
    $region18: #{tpu_custom_call.1} parent=1 // pred_check
      _
    $region19: #{tpu_custom_call.1} parent=1 // pred_check_branch
      %39 = sbr.rel (0) target = $region21
    $region20: #{tpu_custom_call.1} parent=1 // pred_region
      %40 = dma.done [#allocation6], 768
    $region21: #{tpu_custom_call.1} parent=1 // pred_fallthru
      _
    %v42 = vld [vmem:[#allocation2] sm:$0xf]
    %v43 = vld [vmem:[#allocation5] sm:$0xff]
    %v44 = vld [vmem:[#allocation5 + $0x8] sm:$0xf]
    %v45 = vld [vmem:[#allocation5 + $0xc] sm:$0xff]
    %v46 = vld [vmem:[#allocation5 + $0x14] sm:$0xf]
    %v47 = vld [vmem:[#allocation5 + $0x18] sm:$0xff]
    %v48 = vld [vmem:[#allocation5 + $0x20] sm:$0xf]
    %v49 = vld [vmem:[#allocation5 + $0x24] sm:$0xff]
    %v50 = vld [vmem:[#allocation5 + $0x2c] sm:$0xf]
    %v51 = vld [vmem:[%s2] sm:$0x7]
    %v53 = vlaneseq
    %v54 = vshrl.u32 %v53, 7
    %v55 = vsub.s32 0, %v54
    %v56 = vrot.slane %v51, %v55
    %v57 = vlaneseq
    %v58 = vshrl.u32 %v57, 7
    %v59 = vsub.s32 1, %v58
    %v60 = vrot.slane %v51, %v59
    %v61 = vlaneseq
    %v62 = vshrl.u32 %v61, 7
    %v63 = vsub.s32 2, %v62
    %v64 = vrot.slane %v51, %v63
    %v76 = vunpack.c.l.b16 %v43
    %v77 = vunpack.c.h.b16 %v43
    %v78 = vunpack.c.l.b16 %v44
    %v79 = vunpack.c.l.b16 %v45
    %v80 = vunpack.c.h.b16 %v45
    %v81 = vunpack.c.l.b16 %v46
    %v82 = vunpack.c.l.b16 %v47
    %v83 = vunpack.c.h.b16 %v47
    %v84 = vunpack.c.l.b16 %v48
    %v85 = vunpack.c.l.b16 %v49
    %v86 = vunpack.c.h.b16 %v49
    %v87 = vunpack.c.l.b16 %v50
    %v88 = vpack.c.b16 %v79, %v76
    %v89 = vpack.c.b16 %v80, %v77
    %v90 = vpack.c.b16 %v81, %v78
    %v91 = vpack.c.b16 %v85, %v82
    %v92 = vpack.c.b16 %v86, %v83
    %v93 = vpack.c.b16 %v87, %v84
    %vm100 = vcmask 261120
    %v102 = vsel %vm100, %v42, 0
    %104 = vmatprep.subr.bf16.mxu0 %v89
    %105 = vmatpush1.bf16.msra.mxu0 %v88
    %106 = vmatprep.subr.bf16.mxu0 %v92
    %107 = vmatpush1.bf16.msra.mxu0 %v91
    %108 = vmatprep.subr.bf16.mxu0 0
    %109 = vmatpush1.bf16.msra.mxu0 0
    %110 = vmatprep.subr.bf16.mxu0 0
    %111 = vmatpush1.bf16.msra.mxu0 0
    %112 = vmatprep.subr.bf16.mxu0 0
    %113 = vmatpush1.bf16.msra.mxu0 0
    %114 = vmatprep.subr.bf16.mxu0 0
    %115 = vmatpush1.bf16.msra.mxu0 0
    %116 = vmatprep.subr.bf16.mxu0 0
    %117 = vmatpush1.bf16.msra.mxu0 0
    %118 = vmatprep.subr.bf16.mxu0 0
    %119 = vmatpush1.bf16.msra.mxu0 0
    %120 = vmatprep.subr.bf16.mxu0 0
    %121 = vmatpush1.bf16.msra.mxu0 0
    %122 = vmatprep.subr.bf16.mxu0 0
    %123 = vmatpush1.bf16.msra.mxu0 0
    %124 = vmatprep.subr.bf16.mxu0 0
    %125 = vmatpush1.bf16.msra.mxu0 0
    %126 = vmatprep.subr.bf16.mxu0 0
    %127 = vmatpush1.bf16.msra.mxu0 0
    %128 = vmatprep.subr.bf16.mxu0 0
    %129 = vmatpush1.bf16.msra.mxu0 0
    %130 = vmatprep.subr.bf16.mxu0 0
    %131 = vmatpush1.bf16.msra.mxu0 0
    %132 = vmatprep.subr.bf16.mxu0 0
    %133 = vmatpush1.bf16.msra.mxu0 0
    %134 = vmatprep.subr.bf16.mxu0 0
    %135 = vmatpush1.bf16.msra.mxu0 0
    %136 = vmatprep.mubr.bf16.mxu0 0
    %137 = vmatmul.mubr.bf16.gmra.mrb[0].mxu0 %v102
    %v138 = vpop.f32.mrb[0].mxu0
    %v139 = vadd.f32 %v56, %v138
    %v140 = vpop.f32.mrb[0].mxu0
    %v141 = vadd.f32 %v60, %v140
    %v142 = vpop.f32.mrb[0].mxu0
    %v143 = vpop.f32.mrb[0].mxu0
    %144 = vdwg.mxu0
    %145 = vmatprep.subr.bf16.mxu0 0
    %146 = vmatpush1.bf16.msra.mxu0 %v90
    %147 = vmatprep.subr.bf16.mxu0 0
    %148 = vmatpush1.bf16.msra.mxu0 %v93
    %149 = vmatprep.subr.bf16.mxu0 0
    %150 = vmatpush1.bf16.msra.mxu0 0
    %151 = vmatprep.subr.bf16.mxu0 0
    %152 = vmatpush1.bf16.msra.mxu0 0
    %153 = vmatprep.subr.bf16.mxu0 0
    %154 = vmatpush1.bf16.msra.mxu0 0
    %155 = vmatprep.subr.bf16.mxu0 0
    %156 = vmatpush1.bf16.msra.mxu0 0
    %157 = vmatprep.subr.bf16.mxu0 0
    %158 = vmatpush1.bf16.msra.mxu0 0
    %159 = vmatprep.subr.bf16.mxu0 0
    %160 = vmatpush1.bf16.msra.mxu0 0
    %161 = vmatprep.subr.bf16.mxu0 0
    %162 = vmatpush1.bf16.msra.mxu0 0
    %163 = vmatprep.subr.bf16.mxu0 0
    %164 = vmatpush1.bf16.msra.mxu0 0
    %165 = vmatprep.subr.bf16.mxu0 0
    %166 = vmatpush1.bf16.msra.mxu0 0
    %167 = vmatprep.subr.bf16.mxu0 0
    %168 = vmatpush1.bf16.msra.mxu0 0
    %169 = vmatprep.subr.bf16.mxu0 0
    %170 = vmatpush1.bf16.msra.mxu0 0
    %171 = vmatprep.subr.bf16.mxu0 0
    %172 = vmatpush1.bf16.msra.mxu0 0
    %173 = vmatprep.subr.bf16.mxu0 0
    %174 = vmatpush1.bf16.msra.mxu0 0
    %175 = vmatprep.subr.bf16.mxu0 0
    %176 = vmatpush1.bf16.msra.mxu0 0
    %177 = vmatprep.mubr.bf16.mxu0 0
    %178 = vmatmul.mubr.bf16.gmra.mrb[0].mxu0 %v102
    %v179 = vpop.f32.mrb[0].mxu0
    %v180 = vadd.f32 %v64, %v179
    %v181 = vpop.f32.mrb[0].mxu0
    %v182 = vpop.f32.mrb[0].mxu0
    %v183 = vpop.f32.mrb[0].mxu0
    %184 = vdwg.mxu0
    %185 = vmax.xlane.f32.xlu0 %v139
    %v186 = vpop.xlane.xlu0 %185
    %v187 = vsub.f32 %v139, %v186
    %v188 = vmul.f32 %v187, 1.442695
    %v189 = vpow.pop %v188
    %190 = vadd.xlane.f32.xlu0 %v189
    %v191 = vpop.xlane.xlu0 %190
    %v192 = vlog2.pop %v191
    %v193 = vmul.f32 %v192, 0.6931472
    %v194 = vsub.f32 %v187, %v193
    %v195 = vadd.f32 %v194, 0.0
    %196 = vmax.xlane.f32.xlu0 %v141
    %v197 = vpop.xlane.xlu0 %196
    %v198 = vsub.f32 %v141, %v197
    %v199 = vmul.f32 %v198, 1.442695
    %v200 = vpow.pop %v199
    %201 = vadd.xlane.f32.xlu0 %v200
    %v202 = vpop.xlane.xlu0 %201
    %v203 = vlog2.pop %v202
    %v204 = vmul.f32 %v203, 0.6931472
    %v205 = vsub.f32 %v198, %v204
    %v206 = vadd.f32 %v195, %v205
    %207 = vmax.xlane.f32.xlu0 %v180
    %v208 = vpop.xlane.xlu0 %207
    %v209 = vsub.f32 %v180, %v208
    %v210 = vmul.f32 %v209, 1.442695
    %v211 = vpow.pop %v210
    %212 = vadd.xlane.f32.xlu0 %v211
    %v213 = vpop.xlane.xlu0 %212
    %v214 = vlog2.pop %v213
    %v215 = vmul.f32 %v214, 0.6931472
    %v216 = vsub.f32 %v209, %v215
    %v217 = vadd.f32 %v206, %v216
    %v218 = vmul.f32 %v217, 0.33333334
    %219 = vst [vmem:[#allocation7] sm:$0xff] %v218
    // Predicated region
    $region22: #{tpu_custom_call.1} parent=1 // pred_check
      _
    $region23: #{tpu_custom_call.1} parent=1 // pred_check_branch
      %221 = sbr.rel (0) target = $region25
    $region24: #{tpu_custom_call.1} parent=1 // pred_region
      %s223 = ssub.s32 128, 128
      %224 = vsyncadd [#allocation4], %s223
      %s226 = sshll.u32 [#allocation7], 4
      %s227 = int_to_ptr.vmem [resolvable:$true] %s226
      %229 = dma.vmem_to_hbm [thread:$0]  %s227, 128, %s3, [#allocation4]
    $region25: #{tpu_custom_call.1} parent=1 // pred_fallthru
      _
    // Predicated region
    $region26: #{tpu_custom_call.1} parent=1 // pred_check
      _
    $region27: #{tpu_custom_call.1} parent=1 // pred_check_branch
      %231 = sbr.rel (0) target = $region29
    $region28: #{tpu_custom_call.1} parent=1 // pred_region
      %232 = dma.done [#allocation4], 128
    $region29: #{tpu_custom_call.1} parent=1 // pred_fallthru
      _
    %233 = vsyncpa [#allocation3], 1
    %234 = vsyncpa [#allocation6], 1
    %235 = vsyncpa [#allocation4], 1

</llo_original>
